<compile_context>
chip_gen: v7x
topology: tpu7x:2x2x1
jax: 0.10.0
libtpu: 0.0.40
codegen_flags: <defaults>
</compile_context>

<pallas_src>
import functools

import jax
import jax.numpy as jnp
from jax.experimental import pallas as pl
from jax.experimental.pallas import tpu as pltpu


def _tracking_acc_kernel(pred_ref, label_ref, correct_ref, *,
                         threshold, neg_threshold, n_rows, packed_labels):
    pred = pred_ref[...]          # (TN, HW), native dtype — no full-block upcast
    lab = label_ref[...]          # (TN, HW), native dtype
    tn, hw = pred.shape

    # Row-validity mask: the last grid block may extend past the real N rows
    # (those rows contain unspecified data and must not influence the output).
    row0 = pl.program_id(0) * tn
    row_ids = row0 + jax.lax.broadcasted_iota(jnp.int32, (tn, 1), 0)   # (TN, 1)
    row_valid = row_ids < n_rows                                       # (TN, 1)

    # Row-wise max of prediction and the peak mask (exact in bf16).
    pred_max = jnp.max(pred, axis=-1, keepdims=True)                   # (TN, 1)
    is_peak = pred == pred_max                                         # (TN, HW)

    # Column iota kept at (1, HW); broadcasting happens inside the compares,
    # so no full (TN, HW) int32 iota is materialized.
    col = jax.lax.broadcasted_iota(jnp.int32, (1, hw), 1)              # (1, HW)

    if packed_labels:
        # Fused first-occurrence-argmax + label gather in ONE min-reduce:
        # key = (col << 16) | bf16_bits(label); among peak positions the
        # minimum key has the smallest column, and its low 16 bits are the
        # bf16 label there.  Requires hw < 32768 and bfloat16 labels (the
        # value is recovered bit-exactly through the f32 bitcast below).
        lab_bits = pltpu.bitcast(lab, jnp.int16).astype(jnp.int32) & 0xFFFF
        key = (col << 16) | lab_bits                                   # (TN, HW)
        key = jnp.where(is_peak, key, jnp.int32(0x7FFFFFFF))
        key_min = jnp.min(key, axis=-1, keepdims=True)                 # (TN, 1)
        # A bf16 value equals the f32 whose high 16 bits are its bit pattern.
        lab_at_peak = pltpu.bitcast((key_min & 0xFFFF) << 16, jnp.float32)
    else:
        # Generic (exact for any float dtype): first-occurrence argmax index,
        # then a one-hot gather of the label at that index.
        idx = jnp.min(jnp.where(is_peak, col, hw), axis=-1, keepdims=True)
        lab_at_peak = jnp.sum(
            jnp.where(col == idx, lab, jnp.zeros((), lab.dtype)),
            axis=-1, keepdims=True).astype(jnp.float32)                # (TN, 1)

    lab_at_peak = jnp.maximum(lab_at_peak, 0.0)                        # (TN, 1)
    lab_max = jnp.max(lab, axis=-1, keepdims=True).astype(jnp.float32)  # (TN, 1)

    correct = ((lab_at_peak >= threshold) & (lab_max > 0.25)) | \
              ((lab_at_peak < neg_threshold) & (lab_max < 0.25))
    correct_ref[...] = jnp.where(row_valid, correct.astype(jnp.float32), 0.0)


def _pick_vmem_limit_bytes():
    """Chip-aware scoped VMEM limit: 64 MiB on 128-MiB parts (v5e/v6e),
    32 MiB on 64-MiB parts (v7x) or when the query is unavailable."""
    try:
        cap = int(pltpu.get_tpu_info().vmem_capacity_bytes)
    except Exception:          # conservative fallback (sized for v7x)
        cap = 64 * 1024 * 1024
    return 64 * 1024 * 1024 if cap >= 128 * 1024 * 1024 else 32 * 1024 * 1024


def tracking_classification_accuracy(prediction, label, valid_samples=None,
                                     threshold=0.25, neg_threshold=None):
    """JAX/Pallas equivalent of TrackingClassificationAccuracy.forward."""
    if neg_threshold is None:
        neg_threshold = threshold

    h, w = prediction.shape[-2], prediction.shape[-1]
    hw = h * w
    pred2d = prediction.reshape(-1, hw)      # native dtype (no upcast copy)
    lab2d = label.reshape(-1, hw)
    n = pred2d.shape[0]

    packed_labels = (jnp.dtype(lab2d.dtype) == jnp.dtype(jnp.bfloat16)
                     and hw < 32768)

    # --- block sizing --------------------------------------------------------
    vmem_limit = _pick_vmem_limit_bytes()
    in_bytes_per_elem = (jnp.dtype(pred2d.dtype).itemsize +
                         jnp.dtype(lab2d.dtype).itemsize)
    # Honest footprint: 2x double-buffered native inputs + ~3 full-size 32-bit
    # in-kernel temporaries (peak mask / key / select results).
    bytes_per_row = hw * (2 * in_bytes_per_elem + 3 * 4)
    budget = (3 * vmem_limit) // 4
    n8 = ((n + 7) // 8) * 8
    tn = (budget // bytes_per_row) // 8 * 8
    tn = int(max(8, min(512, tn, n8)))
    # Prefer >= 4 grid steps (2 per v7x TensorCore) when rows allow, so the
    # 'parallel' axis pipelines & shards instead of one fully exposed block.
    if n8 >= 32:
        tn = int(min(tn, max(8, (n8 // 4) // 8 * 8)))
    elif n8 >= 16:
        tn = int(min(tn, max(8, (n8 // 2) // 8 * 8)))
    grid = pl.cdiv(n, tn)

    kernel = functools.partial(_tracking_acc_kernel,
                               threshold=float(threshold),
                               neg_threshold=float(neg_threshold),
                               n_rows=n,
                               packed_labels=packed_labels)

    bytes_accessed = (pred2d.size * pred2d.dtype.itemsize +
                      lab2d.size * lab2d.dtype.itemsize +
                      grid * tn * 4)

    correct_padded = pl.pallas_call(
        kernel,
        out_shape=jax.ShapeDtypeStruct((grid * tn, 1), jnp.float32),
        grid_spec=pltpu.PrefetchScalarGridSpec(
            num_scalar_prefetch=0,
            grid=(grid,),
            in_specs=[
                pl.BlockSpec((tn, hw), lambda i: (i, 0)),
                pl.BlockSpec((tn, hw), lambda i: (i, 0)),
            ],
            out_specs=pl.BlockSpec((tn, 1), lambda i: (i, 0)),
        ),
        compiler_params=pltpu.CompilerParams(
            dimension_semantics=("parallel",),
            vmem_limit_bytes=int(vmem_limit)),
        cost_estimate=pl.CostEstimate(flops=8 * n * hw,
                                      transcendentals=0,
                                      bytes_accessed=int(bytes_accessed)),
    )(pred2d, lab2d)

    prediction_correct = correct_padded[:n, 0]   # (N,) float32 in {0, 1}

    # Tiny final reduction stays in plain JAX (negligible vs. streamed bytes).
    if valid_samples is not None:
        valid = valid_samples.astype(jnp.float32).reshape(-1)
        num_valid = jnp.sum(valid)
        acc = jnp.where(num_valid > 0,
                        jnp.sum(valid * prediction_correct) /
                        jnp.maximum(num_valid, 1.0),
                        jnp.float32(1.0))
    else:
        acc = jnp.mean(prediction_correct)

    return acc, prediction_correct


def _reference(prediction, label, valid_samples=None, threshold=0.25,
               neg_threshold=None):
    """Pure-JAX reference mirroring the PyTorch module."""
    if neg_threshold is None:
        neg_threshold = threshold
    hw = prediction.shape[-2] * prediction.shape[-1]
    p = prediction.reshape(-1, hw)
    l = label.reshape(-1, hw)
    argmax_id = jnp.argmax(p, axis=1)
    label_max = jnp.max(l, axis=1).astype(jnp.float32)
    lap = jnp.maximum(l[jnp.arange(p.shape[0]), argmax_id], 0.0).astype(jnp.float32)
    correct = ((lap >= threshold) & (label_max > 0.25)) | \
              ((lap < neg_threshold) & (label_max < 0.25))
    if valid_samples is not None:
        v = valid_samples.astype(jnp.float32).reshape(-1)
        nv = v.sum()
        acc = jnp.where(nv > 0, (v * correct.astype(jnp.float32)).sum() /
                        jnp.maximum(nv, 1.0), 1.0)
    else:
        acc = jnp.mean(correct.astype(jnp.float32))
    return acc, correct.astype(jnp.float32)


if __name__ == "__main__":
    key = jax.random.PRNGKey(0)
    k1, k2, k3 = jax.random.split(key, 3)

    # prediction/label: (num_seq, batch, H, W) -> flattened to (8, 256) rows
    prediction = jax.random.normal(k1, (2, 4, 16, 16), dtype=jnp.float32)
    label = jax.random.uniform(k2, (2, 4, 16, 16), dtype=jnp.float32,
                               minval=-0.2, maxval=1.0)
    valid = (jax.random.uniform(k3, (2, 4)) > 0.3).astype(jnp.float32)

    # float32 path (generic in-kernel gather) with valid_samples.
    acc, correct = tracking_classification_accuracy(
        prediction, label, valid_samples=valid, threshold=0.25)
    acc = jax.block_until_ready(acc)
    correct = jax.block_until_ready(correct)

    acc_ref, correct_ref = _reference(prediction, label, valid_samples=valid,
                                      threshold=0.25)
    assert jnp.allclose(correct, correct_ref), "per-sample flags mismatch"
    assert jnp.allclose(acc, acc_ref, atol=1e-6), "accuracy mismatch"

    # valid_samples=None path.
    acc2, _ = tracking_classification_accuracy(prediction, label,
                                               threshold=0.25)
    acc2_ref, _ = _reference(prediction, label, threshold=0.25)
    assert jnp.allclose(jax.block_until_ready(acc2), acc2_ref, atol=1e-6)

    # native-bf16 path: half the HBM traffic, native-dtype compute, and the
    # fused packed-key argmax/label-gather (one fewer XLU reduction).
    pred_bf16 = prediction.astype(jnp.bfloat16)
    lab_bf16 = label.astype(jnp.bfloat16)
    acc3, correct3 = tracking_classification_accuracy(
        pred_bf16, lab_bf16, valid_samples=valid, threshold=0.25)
    acc3 = jax.block_until_ready(acc3)
    correct3 = jax.block_until_ready(correct3)
    acc3_ref, correct3_ref = _reference(pred_bf16, lab_bf16,
                                        valid_samples=valid, threshold=0.25)
    assert jnp.allclose(correct3, correct3_ref), "bf16 per-sample flags mismatch"
    assert jnp.allclose(acc3, acc3_ref, atol=1e-6), "bf16 accuracy mismatch"

    print("KERNEL_OK")
</pallas_src>

<mosaic_0001>
module attributes {stable_mosaic.version = 11 : i64} {
  func.func @_tracking_acc_kernel(%arg0: i32, %arg1: memref<8x256xf32, #tpu.memory_space<vmem>>, %arg2: memref<8x256xf32, #tpu.memory_space<vmem>>, %arg3: memref<8x1xf32, #tpu.memory_space<vmem>>) attributes {dimension_semantics = [#tpu.dimension_semantics<parallel>], iteration_bounds = array<i64: 1>, scalar_prefetch = 0 : i64, scratch_operands = 0 : i64, tpu.core_type = #tpu.core_type<tc>, window_params = [{transform_indices = @transform_0, window_bounds = array<i64: 8, 256>}, {transform_indices = @transform_1, window_bounds = array<i64: 8, 256>}, {transform_indices = @transform_2, window_bounds = array<i64: 8, 1>}]} {
    %c0 = arith.constant 0 : index
    %c0_0 = arith.constant 0 : index
    %0 = vector.load %arg1[%c0, %c0_0] : memref<8x256xf32, #tpu.memory_space<vmem>>, vector<8x256xf32>
    %c0_1 = arith.constant 0 : index
    %c0_2 = arith.constant 0 : index
    %1 = vector.load %arg2[%c0_1, %c0_2] : memref<8x256xf32, #tpu.memory_space<vmem>>, vector<8x256xf32>
    %c8_i32 = arith.constant 8 : i32
    %2 = arith.muli %arg0, %c8_i32 : i32
    %3 = tpu.iota {dimensions = array<i32: 0>} : vector<8x1xi32>
    %4 = vector.broadcast %2 : i32 to vector<8x1xi32>
    %5 = arith.addi %4, %3 : vector<8x1xi32>
    %c8_i32_3 = arith.constant 8 : i32
    %6 = vector.broadcast %c8_i32_3 : i32 to vector<8x1xi32>
    %7 = arith.cmpi slt, %5, %6 : vector<8x1xi32>
    %cst = arith.constant dense<0xFF800000> : vector<8xf32>
    %8 = vector.multi_reduction <maximumf>, %0, %cst [1] : vector<8x256xf32> to vector<8xf32>
    %9 = vector.shape_cast %8 : vector<8xf32> to vector<8x1xf32>
    %10 = vector.broadcast %9 : vector<8x1xf32> to vector<8x256xf32>
    %11 = arith.cmpf oeq, %0, %10 : vector<8x256xf32>
    %12 = tpu.iota {dimensions = array<i32: 1>} : vector<1x256xi32>
    %c256_i32 = arith.constant 256 : i32
    %13 = vector.shape_cast %12 : vector<1x256xi32> to vector<1x256xi32>
    %14 = vector.broadcast %13 : vector<1x256xi32> to vector<8x256xi32>
    %15 = vector.broadcast %c256_i32 : i32 to vector<8x256xi32>
    %16 = arith.select %11, %14, %15 : vector<8x256xi1>, vector<8x256xi32>
    %cst_4 = arith.constant dense<2147483647> : vector<8xi32>
    %17 = vector.multi_reduction <minsi>, %16, %cst_4 [1] : vector<8x256xi32> to vector<8xi32>
    %18 = vector.shape_cast %17 : vector<8xi32> to vector<8x1xi32>
    %19 = vector.broadcast %12 : vector<1x256xi32> to vector<8x256xi32>
    %20 = vector.broadcast %18 : vector<8x1xi32> to vector<8x256xi32>
    %21 = arith.cmpi eq, %19, %20 : vector<8x256xi32>
    %cst_5 = arith.constant 0.000000e+00 : f32
    %22 = vector.broadcast %cst_5 : f32 to vector<8x256xf32>
    %23 = arith.select %21, %1, %22 : vector<8x256xi1>, vector<8x256xf32>
    %cst_6 = arith.constant dense<0.000000e+00> : vector<8xf32>
    %24 = vector.multi_reduction <add>, %23, %cst_6 [1] : vector<8x256xf32> to vector<8xf32>
    %25 = vector.shape_cast %24 : vector<8xf32> to vector<8x1xf32>
    %cst_7 = arith.constant 0.000000e+00 : f32
    %26 = vector.broadcast %cst_7 : f32 to vector<8x1xf32>
    %27 = arith.maximumf %25, %26 : vector<8x1xf32>
    %cst_8 = arith.constant dense<0xFF800000> : vector<8xf32>
    %28 = vector.multi_reduction <maximumf>, %1, %cst_8 [1] : vector<8x256xf32> to vector<8xf32>
    %29 = vector.shape_cast %28 : vector<8xf32> to vector<8x1xf32>
    %cst_9 = arith.constant 2.500000e-01 : f32
    %30 = vector.broadcast %cst_9 : f32 to vector<8x1xf32>
    %31 = arith.cmpf oge, %27, %30 : vector<8x1xf32>
    %cst_10 = arith.constant 2.500000e-01 : f32
    %32 = vector.broadcast %cst_10 : f32 to vector<8x1xf32>
    %33 = arith.cmpf ogt, %29, %32 : vector<8x1xf32>
    %34 = arith.andi %31, %33 : vector<8x1xi1>
    %cst_11 = arith.constant 2.500000e-01 : f32
    %35 = vector.broadcast %cst_11 : f32 to vector<8x1xf32>
    %36 = arith.cmpf olt, %27, %35 : vector<8x1xf32>
    %cst_12 = arith.constant 2.500000e-01 : f32
    %37 = vector.broadcast %cst_12 : f32 to vector<8x1xf32>
    %38 = arith.cmpf olt, %29, %37 : vector<8x1xf32>
    %39 = arith.andi %36, %38 : vector<8x1xi1>
    %40 = arith.ori %34, %39 : vector<8x1xi1>
    %41 = arith.extui %40 : vector<8x1xi1> to vector<8x1xi32>
    %42 = arith.sitofp %41 : vector<8x1xi32> to vector<8x1xf32>
    %cst_13 = arith.constant 0.000000e+00 : f32
    %43 = vector.broadcast %cst_13 : f32 to vector<8x1xf32>
    %44 = arith.select %7, %42, %43 : vector<8x1xi1>, vector<8x1xf32>
    %c0_14 = arith.constant 0 : index
    %c0_15 = arith.constant 0 : index
    %45 = vector.load %arg3[%c0_14, %c0_15] : memref<8x1xf32, #tpu.memory_space<vmem>>, vector<8x1xf32>
    tpu.vector_store %arg3[%c0_14, %c0_15], %44 {strides = array<i32>} : memref<8x1xf32, #tpu.memory_space<vmem>>, vector<8x1xf32>,
    return
  }
  func.func @transform_0(%arg0: i32) -> (i32, i32) {
    %c0_i32 = arith.constant 0 : i32
    %c0_i32_0 = arith.constant 0 : i32
    return %arg0, %c0_i32 : i32, i32
  }
  func.func @transform_1(%arg0: i32) -> (i32, i32) {
    %c0_i32 = arith.constant 0 : i32
    %c0_i32_0 = arith.constant 0 : i32
    return %arg0, %c0_i32 : i32, i32
  }
  func.func @transform_2(%arg0: i32) -> (i32, i32) {
    %c0_i32 = arith.constant 0 : i32
    %c0_i32_0 = arith.constant 0 : i32
    return %arg0, %c0_i32 : i32, i32
  }
}

</mosaic_0001>

<llo_original>
// kernel: tpu_custom_call.1
$region0: #{tpu_custom_call.1}
  #allocation0 [shape = 'u32[]', space=smem, size = 0x4, offset = 0x4, fixed_abs, tag = 'smem constant byte address 0x4 - core index']
  #allocation1 [shape = 'u32[144,128]{1,0:T(1,128)}', space=vmem, size = 0x12000, scoped, tag = 'internal scratch']
  %s0 = inlined_call_operand.hbm [shape: f32[8,256], index: 0, kind: input, shape index: {}]
  %s1 = inlined_call_operand.hbm [shape: f32[8,256], index: 1, kind: input, shape index: {}]
  %s2 = inlined_call_operand.vmem [shape: f32[8,1], index: 2, kind: output, shape index: {}]
  %s3 = sld [smem:[#allocation0]]
  $region26: #{tpu_custom_call.1} parent=0
    _
  %s5 = ssub.s32 1, %s3
  %s6 = scalar_select 0, %s5, %s3
  $region1: #{tpu_custom_call.1} parent=0
    #allocation2 [shape = 'u8[8192]{0}', space=vmem, size = 0x2000, scoped, tag = 'input window, operand 0, single buffered']
    #allocation3 [shape = 's32[1]{0}', space=sflag, size = 0x4, scoped, tag = 'scoped memory for tpu_custom_call.1']
    #allocation4 [shape = 'u8[8192]{0}', space=vmem, size = 0x2000, scoped, tag = 'input window, operand 1, single buffered']
    #allocation5 [shape = 's32[1]{0}', space=sflag, size = 0x4, scoped, tag = 'scoped memory for tpu_custom_call.1']
    %7 = vsyncpa [#allocation3], 0
    %8 = vsyncpa [#allocation5], 0
    // Predicated region
    $region2: #{tpu_custom_call.1} parent=1 // pred_check
      _
    $region3: #{tpu_custom_call.1} parent=1 // pred_check_branch
      %10 = sbr.rel (0) target = $region5
    $region4: #{tpu_custom_call.1} parent=1 // pred_region
      %s12 = ssub.s32 256, 256
      %13 = vsyncadd [#allocation3], %s12
      %s15 = sshll.u32 [#allocation2], 4
      %s16 = int_to_ptr.vmem [resolvable:$true] %s15
      %18 = dma.hbm_to_vmem [thread:$0]  %s0, 256, %s16, [#allocation3]
    $region5: #{tpu_custom_call.1} parent=1 // pred_fallthru
      _
    // Predicated region
    $region6: #{tpu_custom_call.1} parent=1 // pred_check
      _
    $region7: #{tpu_custom_call.1} parent=1 // pred_check_branch
      %20 = sbr.rel (0) target = $region9
    $region8: #{tpu_custom_call.1} parent=1 // pred_region
      %s22 = ssub.s32 256, 256
      %23 = vsyncadd [#allocation5], %s22
      %s25 = sshll.u32 [#allocation4], 4
      %s26 = int_to_ptr.vmem [resolvable:$true] %s25
      %28 = dma.hbm_to_vmem [thread:$0]  %s1, 256, %s26, [#allocation5]
    $region9: #{tpu_custom_call.1} parent=1 // pred_fallthru
      _
    // Predicated region
    $region10: #{tpu_custom_call.1} parent=1 // pred_check
      _
    $region11: #{tpu_custom_call.1} parent=1 // pred_check_branch
      %30 = sbr.rel (0) target = $region13
    $region12: #{tpu_custom_call.1} parent=1 // pred_region
      %31 = dma.done [#allocation3], 256
    $region13: #{tpu_custom_call.1} parent=1 // pred_fallthru
      _
    // Predicated region
    $region14: #{tpu_custom_call.1} parent=1 // pred_check
      _
    $region15: #{tpu_custom_call.1} parent=1 // pred_check_branch
      %33 = sbr.rel (0) target = $region17
    $region16: #{tpu_custom_call.1} parent=1 // pred_region
      %34 = dma.done [#allocation5], 256
    $region17: #{tpu_custom_call.1} parent=1 // pred_fallthru
      _
    %v35 = vld [vmem:[#allocation2] sm:$0xff]
    %v36 = vld [vmem:[#allocation2 + $0x8] sm:$0xff]
    %v37 = vld [vmem:[#allocation4] sm:$0xff]
    %v38 = vld [vmem:[#allocation4 + $0x8] sm:$0xff]
    %s39 = smul.u32 0, 8
    %v40 = vlaneseq
    %v41 = vshrl.u32 %v40, 7
    %v42 = vstv %s39
    %v43 = vadd.s32 %v42, %v41
    %vm44 = vcmp.lt.s32.totalorder %v43, 8
    %v45 = vmax.f32 %v35, %v36
    %46 = vmax.xlane.f32.xlu0 %v45
    %v47 = vpop.xlane.xlu0 %46
    %vm48 = vcmp.eq.f32.partialorder %v35, %v47
    %vm49 = vcmp.eq.f32.partialorder %v36, %v47
    %v50 = vlaneseq
    %v51 = vand.u32 %v50, 127
    %v52 = vadd.s32 %v51, 128
    %v53 = vsel %vm48, %v51, 256
    %v54 = vsel %vm49, %v52, 256
    %vm55 = vcmp.lt.s32.totalorder %v53, %v54
    %v56 = vsel %vm55, %v53, %v54
    %v57 = vand.u32 %v56, 65535
    %v58 = vshra.s32 %v56, 16
    %v59 = vcvt.s32.f32 %v57
    %v60 = vcvt.s32.f32 %v58
    %61 = vmin.xlane.f32.xlu0 %v60
    %v62 = vpop.xlane.xlu0 %61
    %vm63 = vcmp.eq.f32.partialorder %v60, %v62
    %v64 = vsel %vm63, %v59, inf
    %65 = vmin.xlane.f32.xlu0 %v64
    %v66 = vpop.xlane.xlu0 %65
    %v67 = vcvt.f32.s32 %v66
    %v68 = vcvt.f32.s32 %v62
    %v69 = vshll.u32 %v68, 16
    %v70 = vadd.s32 %v69, %v67
    %vm71 = vcmp.eq.s32.totalorder %v51, %v70
    %vm72 = vcmp.eq.s32.totalorder %v52, %v70
    %v73 = vsel %vm71, %v37, 0.0
    %v74 = vsel %vm72, %v38, 0.0
    %v75 = vadd.f32 %v73, %v74
    %76 = vadd.xlane.f32.xlu0 %v75
    %v77 = vpop.xlane.xlu0 %76
    %v78 = vmax.f32 %v77, 0.0
    %v79 = vmax.f32 %v37, %v38
    %80 = vmax.xlane.f32.xlu0 %v79
    %v81 = vpop.xlane.xlu0 %80
    %vm82 = vcmp.ge.f32.partialorder %v78, 0.25
    %vm83 = vcmp.gt.f32.partialorder %v81, 0.25
    %vm84 = vmand %vm82, %vm83
    %vm85 = vcmp.lt.f32.partialorder %v78, 0.25
    %vm86 = vcmp.lt.f32.partialorder %v81, 0.25
    %vm87 = vmand %vm85, %vm86
    %vm88 = vmor %vm84, %vm87
    %v89 = vsel %vm88, 1, 0
    %v90 = vcvt.s32.f32 %v89
    %v91 = vsel %vm44, %v90, 0.0
    %vm92 = vcmask 7168
    %93 = vst.msk [vmem:[%s2] sm:$0xff] %vm92, %v91
    // Predicated region
    $region18: #{tpu_custom_call.1} parent=1 // pred_check
      _
    $region19: #{tpu_custom_call.1} parent=1 // pred_check_branch
      %95 = sbr.rel (0) target = $region21
    $region20: #{tpu_custom_call.1} parent=1 // pred_region
      _
    $region21: #{tpu_custom_call.1} parent=1 // pred_fallthru
      _
    // Predicated region
    $region22: #{tpu_custom_call.1} parent=1 // pred_check
      _
    $region23: #{tpu_custom_call.1} parent=1 // pred_check_branch
      %97 = sbr.rel (0) target = $region25
    $region24: #{tpu_custom_call.1} parent=1 // pred_region
      _
    $region25: #{tpu_custom_call.1} parent=1 // pred_fallthru
      _
    %98 = vsyncpa [#allocation3], 1
    %99 = vsyncpa [#allocation5], 1

</llo_original>
